<compile_context>
chip_gen: v7x
topology: tpu7x:2x2x1
jax: 0.10.0
libtpu: 0.0.40
codegen_flags: <defaults>
</compile_context>

<pallas_src>
import math
import functools

import jax
import jax.numpy as jnp
from jax.experimental import pallas as pl
from jax.experimental.pallas import tpu as pltpu


def _round_up(x, m):
    return ((x + m - 1) // m) * m


def _default_vmem_limit():
    # v7x: 64 MiB/TC -> leave headroom for Mosaic internal scratch/semaphores;
    # v5e/v6e: 128 MiB -> allow ~100 MiB so bigger k-tiles / deeper buffering
    # are available.  Fallback is safe on every chip.
    try:
        cap = pltpu.get_tpu_info().vmem_capacity_bytes
        return min(int(cap * 4 // 5), 100 * 1024 * 1024)
    except Exception:
        return 48 * 1024 * 1024


_VMEM_LIMIT = _default_vmem_limit()
# Grid-invariant weights: single VMEM buffer (their index_maps are constant so
# re-fetch is already elided; this halves their VMEM residency).
_WEIGHT_BUF = pl.Buffered(buffer_count=1)


def _pick_tile(d, target, align):
    """Return (tile, padded_extent) for one dimension.

    If the dim fits in one tile, use its full unpadded extent (a block dim equal
    to the array dim is always legal).  Otherwise use the largest align-multiple
    tile <= target that divides the align-rounded extent (minimal padding).
    """
    if d <= target:
        return d, d
    dp = _round_up(d, align)
    t = (target // align) * align
    while dp % t:
        t -= align
    return t, dp


# ----------------------------------------------------------------------------
# Tiled linear (bf16 operands, f32 accumulation)
# ----------------------------------------------------------------------------

def _matmul_acc_kernel(x_ref, w_ref, o_ref, acc_ref):
    @pl.when(pl.program_id(2) == 0)
    def _():
        acc_ref[...] = jnp.zeros_like(acc_ref)

    acc_ref[...] += jnp.dot(x_ref[...], w_ref[...],
                            preferred_element_type=jnp.float32)

    @pl.when(pl.program_id(2) == pl.num_programs(2) - 1)
    def _():
        o_ref[...] = acc_ref[...].astype(o_ref.dtype)


def _matmul_bias_acc_kernel(x_ref, w_ref, b_ref, o_ref, acc_ref):
    @pl.when(pl.program_id(2) == 0)
    def _():
        acc_ref[...] = jnp.zeros_like(acc_ref)

    acc_ref[...] += jnp.dot(x_ref[...], w_ref[...],
                            preferred_element_type=jnp.float32)

    @pl.when(pl.program_id(2) == pl.num_programs(2) - 1)
    def _():
        o_ref[...] = (acc_ref[...] + b_ref[...]).astype(o_ref.dtype)


def _matmul_1k_kernel(x_ref, w_ref, o_ref):
    o_ref[...] = jnp.dot(x_ref[...], w_ref[...],
                         preferred_element_type=jnp.float32).astype(o_ref.dtype)


def _matmul_bias_1k_kernel(x_ref, w_ref, b_ref, o_ref):
    o_ref[...] = (jnp.dot(x_ref[...], w_ref[...],
                          preferred_element_type=jnp.float32)
                  + b_ref[...]).astype(o_ref.dtype)


def pallas_linear(x, w_t, b=None, *, out_dtype=jnp.float32,
                  tm=256, tn=256, tk=512):
    """x: [..., K]; w_t: [K, N] (transposed PyTorch weight, bf16); b: [N]|None."""
    lead = x.shape[:-1]
    K = x.shape[-1]
    N = w_t.shape[-1]
    x2 = x.reshape(-1, K).astype(jnp.bfloat16)
    w2 = w_t.astype(jnp.bfloat16)          # no-op when weights are stored bf16
    M = x2.shape[0]

    tm, Mp = _pick_tile(M, tm, 16)         # bf16 packs 16 rows / sublane group
    tn, Np = _pick_tile(N, tn, 128)
    tk, Kp = _pick_tile(K, tk, 128)

    if (Mp, Kp) != (M, K):
        x2 = jnp.pad(x2, ((0, Mp - M), (0, Kp - K)))
    if (Kp, Np) != (K, N):
        w2 = jnp.pad(w2, ((0, Kp - K), (0, Np - N)))

    nk = Kp // tk
    out_shape = jax.ShapeDtypeStruct((Mp, Np), out_dtype)

    if b is not None:
        b2 = b.reshape(1, -1).astype(jnp.float32)
        if Np != N:
            b2 = jnp.pad(b2, ((0, 0), (0, Np - N)))

    if nk == 1:
        # Single reduction step: no scratch accumulator, no pl.when branches.
        grid = (Mp // tm, Np // tn)
        cparams = pltpu.CompilerParams(
            dimension_semantics=("parallel", "parallel"),
            vmem_limit_bytes=_VMEM_LIMIT)
        if b is None:
            out = pl.pallas_call(
                _matmul_1k_kernel,
                out_shape=out_shape,
                grid=grid,
                in_specs=[pl.BlockSpec((tm, tk), lambda i, j: (i, 0)),
                          pl.BlockSpec((tk, tn), lambda i, j: (0, j))],
                out_specs=pl.BlockSpec((tm, tn), lambda i, j: (i, j)),
                compiler_params=cparams,
            )(x2, w2)
        else:
            out = pl.pallas_call(
                _matmul_bias_1k_kernel,
                out_shape=out_shape,
                grid=grid,
                in_specs=[pl.BlockSpec((tm, tk), lambda i, j: (i, 0)),
                          pl.BlockSpec((tk, tn), lambda i, j: (0, j)),
                          pl.BlockSpec((1, tn), lambda i, j: (0, j))],
                out_specs=pl.BlockSpec((tm, tn), lambda i, j: (i, j)),
                compiler_params=cparams,
            )(x2, w2, b2)
    else:
        grid = (Mp // tm, Np // tn, nk)
        cparams = pltpu.CompilerParams(
            dimension_semantics=("parallel", "parallel", "arbitrary"),
            vmem_limit_bytes=_VMEM_LIMIT)
        scratch = [pltpu.VMEM((tm, tn), jnp.float32)]
        if b is None:
            out = pl.pallas_call(
                _matmul_acc_kernel,
                out_shape=out_shape,
                grid=grid,
                in_specs=[pl.BlockSpec((tm, tk), lambda i, j, k: (i, k)),
                          pl.BlockSpec((tk, tn), lambda i, j, k: (k, j))],
                out_specs=pl.BlockSpec((tm, tn), lambda i, j, k: (i, j)),
                scratch_shapes=scratch,
                compiler_params=cparams,
            )(x2, w2)
        else:
            out = pl.pallas_call(
                _matmul_bias_acc_kernel,
                out_shape=out_shape,
                grid=grid,
                in_specs=[pl.BlockSpec((tm, tk), lambda i, j, k: (i, k)),
                          pl.BlockSpec((tk, tn), lambda i, j, k: (k, j)),
                          pl.BlockSpec((1, tn), lambda i, j, k: (0, j))],
                out_specs=pl.BlockSpec((tm, tn), lambda i, j, k: (i, j)),
                scratch_shapes=scratch,
                compiler_params=cparams,
            )(x2, w2, b2)

    return out[:M, :N].reshape(*lead, N)


# ----------------------------------------------------------------------------
# Fused VL_bridge_encoder_layer kernel
#   cross-MHA(query=img, key/value=pre-projected text, key_padding_mask bias)
#   -> FFN (streamed over F-chunks) -> +residual -> LayerNorm
# Grid: (batch, query-tile, F-chunk); the F axis is the reduction/accumulation
# axis ("arbitrary").  Reference semantics: out = LN(FFN(attn) + attn) -- the
# PyTorch FeedForwardNet applies the residual and LayerNorm around the MLP only.
# ----------------------------------------------------------------------------

def _fusion_layer_kernel(img_ref, k_ref, v_ref, bias_ref,
                         wq_ref, bq_ref, wo_ref, bo_ref,
                         w1_ref, w2_ref, g_ref, beta_ref,
                         o_ref, attn_scr, acc_scr, *, num_heads, eps):
    f = pl.program_id(2)

    # ---- attention sub-block: computed once per (batch, query-tile) at f == 0
    @pl.when(f == 0)
    def _():
        q_in = img_ref[0]                          # [tp, D] bf16
        tp, D = q_in.shape
        hd = D // num_heads
        Lp = k_ref.shape[1]

        # wq / bq were pre-scaled by 1/sqrt(head_dim) at init.
        q_proj = jnp.dot(q_in, wq_ref[...],
                         preferred_element_type=jnp.float32) + bq_ref[...]

        # cast to bf16 BEFORE the per-head relayout (halves XLU/vreg traffic);
        # k/v arrive pre-projected in bf16 already.
        qh = jnp.transpose(
            q_proj.astype(jnp.bfloat16).reshape(tp, num_heads, hd), (1, 0, 2))
        kh = jnp.transpose(k_ref[0].reshape(Lp, num_heads, hd), (1, 0, 2))
        vh = jnp.transpose(v_ref[0].reshape(Lp, num_heads, hd), (1, 0, 2))

        s = jnp.einsum('hpd,hkd->hpk', qh, kh,
                       preferred_element_type=jnp.float32)
        # additive key-padding bias (0 valid / -1e30 masked), precomputed in the
        # wrapper.  NOTE: a fully-masked key row would give 0/0 -> NaN; the
        # reference module always has >=1 valid token per row.
        s = s + bias_ref[...]
        s = s - jnp.max(s, axis=-1, keepdims=True)
        p = jnp.exp(s)
        # approx reciprocal (EUP slot): ~2^-12 rel. error, fine for bf16 output.
        p = p * pl.reciprocal(jnp.sum(p, axis=-1, keepdims=True), approx=True)

        ctx = jnp.einsum('hpk,hkd->hpd', p.astype(jnp.bfloat16), vh,
                         preferred_element_type=jnp.float32)
        ctx = jnp.transpose(ctx, (1, 0, 2)).reshape(tp, D)

        attn_scr[...] = jnp.dot(ctx.astype(jnp.bfloat16), wo_ref[...],
                                preferred_element_type=jnp.float32) + bo_ref[...]
        acc_scr[...] = jnp.zeros_like(acc_scr)

    # ---- FFN streamed over F-chunks: acc += ReLU(attn @ w1[:, f]) @ w2[f, :]
    attn_bf = attn_scr[...].astype(jnp.bfloat16)
    h = jnp.maximum(jnp.dot(attn_bf, w1_ref[...],
                            preferred_element_type=jnp.float32), 0.0)
    acc_scr[...] += jnp.dot(h.astype(jnp.bfloat16), w2_ref[...],
                            preferred_element_type=jnp.float32)

    # ---- residual + LayerNorm epilogue on the last F-chunk
    @pl.when(f == pl.num_programs(2) - 1)
    def _():
        z = acc_scr[...] + attn_scr[...]
        mean = jnp.mean(z, axis=-1, keepdims=True)
        var = jnp.mean((z - mean) * (z - mean), axis=-1, keepdims=True)
        zn = (z - mean) * jax.lax.rsqrt(var + eps)
        o_ref[0] = (zn * g_ref[...] + beta_ref[...]).astype(o_ref.dtype)


def pallas_fusion_layer(img, k, v, bias, params, num_heads, tp, tf, eps=1e-5):
    """img: [B, Pp, D] bf16; k, v: [B, Lp, D] bf16 (pre-projected per layer);
    bias: [B, 1, Lp] f32 additive key-padding bias."""
    B, Pp, D = img.shape
    Lp = k.shape[1]
    F = params["w1"].shape[-1]
    assert F % tf == 0 and Pp % tp == 0
    kernel = functools.partial(_fusion_layer_kernel,
                               num_heads=num_heads, eps=eps)
    w1buf = dict(pipeline_mode=_WEIGHT_BUF)   # grid-invariant weights: 1 buffer
    return pl.pallas_call(
        kernel,
        out_shape=jax.ShapeDtypeStruct((B, Pp, D), jnp.bfloat16),
        grid=(B, Pp // tp, F // tf),
        in_specs=[
            pl.BlockSpec((1, tp, D), lambda b, i, f: (b, i, 0)),   # img queries
            pl.BlockSpec((1, Lp, D), lambda b, i, f: (b, 0, 0)),   # K (projected)
            pl.BlockSpec((1, Lp, D), lambda b, i, f: (b, 0, 0)),   # V (projected)
            pl.BlockSpec((1, 1, Lp), lambda b, i, f: (b, 0, 0)),   # mask bias
            pl.BlockSpec((D, D), lambda b, i, f: (0, 0), **w1buf),  # wq (scaled)
            pl.BlockSpec((1, D), lambda b, i, f: (0, 0), **w1buf),  # bq (scaled)
            pl.BlockSpec((D, D), lambda b, i, f: (0, 0), **w1buf),  # wo
            pl.BlockSpec((1, D), lambda b, i, f: (0, 0), **w1buf),  # bo
            pl.BlockSpec((D, tf), lambda b, i, f: (0, f)),          # w1 F-chunk
            pl.BlockSpec((tf, D), lambda b, i, f: (f, 0)),          # w2 F-chunk
            pl.BlockSpec((1, D), lambda b, i, f: (0, 0), **w1buf),  # ln gamma
            pl.BlockSpec((1, D), lambda b, i, f: (0, 0), **w1buf),  # ln beta
        ],
        out_specs=pl.BlockSpec((1, tp, D), lambda b, i, f: (b, i, 0)),
        scratch_shapes=[pltpu.VMEM((tp, D), jnp.float32),   # attention output
                        pltpu.VMEM((tp, D), jnp.float32)],  # FFN accumulator
        compiler_params=pltpu.CompilerParams(
            dimension_semantics=("parallel", "parallel", "arbitrary"),
            vmem_limit_bytes=_VMEM_LIMIT),
    )(img, k, v, bias,
      params["wq"], params["bq"], params["wo"], params["bo"],
      params["w1"], params["w2"], params["ln_g"], params["ln_b"])


# ----------------------------------------------------------------------------
# Pooler stand-in fused with the classifier head:
#   mean-pool over patches -> LayerNorm (fc_norm) -> Linear(D, 5) (lane-padded)
# ----------------------------------------------------------------------------

def _pool_head_kernel(x_ref, g_ref, b_ref, wh_ref, bh_ref, o_ref, *, eps):
    x = x_ref[0].astype(jnp.float32)                      # [P, D]
    pooled = jnp.mean(x, axis=0, keepdims=True)           # [1, D]
    mean = jnp.mean(pooled, axis=-1, keepdims=True)
    var = jnp.mean((pooled - mean) * (pooled - mean), axis=-1, keepdims=True)
    normed = (pooled - mean) * jax.lax.rsqrt(var + eps) * g_ref[...] + b_ref[...]
    logits = jnp.dot(normed.astype(jnp.bfloat16), wh_ref[...],
                     preferred_element_type=jnp.float32) + bh_ref[...]
    o_ref[0] = logits.astype(o_ref.dtype)


def pallas_pool_head(x, g, b, w_head, b_head, eps=1e-5):
    """x: [B, P, D]; w_head: [D, NCpad] bf16 (lane-padded); b_head: [1, NCpad]."""
    B, P, D = x.shape
    NC = w_head.shape[-1]
    kernel = functools.partial(_pool_head_kernel, eps=eps)
    w1buf = dict(pipeline_mode=_WEIGHT_BUF)
    out = pl.pallas_call(
        kernel,
        out_shape=jax.ShapeDtypeStruct((B, 1, NC), jnp.float32),
        grid=(B,),
        in_specs=[
            pl.BlockSpec((1, P, D), lambda i: (i, 0, 0)),
            pl.BlockSpec((1, D), lambda i: (0, 0), **w1buf),
            pl.BlockSpec((1, D), lambda i: (0, 0), **w1buf),
            pl.BlockSpec((D, NC), lambda i: (0, 0), **w1buf),
            pl.BlockSpec((1, NC), lambda i: (0, 0), **w1buf),
        ],
        out_specs=pl.BlockSpec((1, 1, NC), lambda i: (i, 0, 0)),
        compiler_params=pltpu.CompilerParams(
            dimension_semantics=("parallel",),
            vmem_limit_bytes=_VMEM_LIMIT),
    )(x, g, b, w_head, b_head)
    return out.reshape(B, NC)


# ----------------------------------------------------------------------------
# Model (deterministic in-script parameters)
# ----------------------------------------------------------------------------

class VLFusionEncodersPallas:
    """JAX/Pallas port of VL_fusion_encoders.

    Original sizes: repre_dim=1152, d_ffn=4096, text hidden=1024, 8 heads.
    They are parameterized so the demo runs at small shapes.
    """

    def __init__(self, cnt_layer, *, repre_dim=1152, d_ffn=4096, l_dim=1024,
                 num_heads=8, vocab_size=100, img_channels=3, patch=4,
                 num_classes=5, ffn_tile=None, seed=0):
        assert repre_dim % num_heads == 0
        self.repre_dim = D = repre_dim
        self.d_ffn = d_ffn
        self.num_heads = num_heads
        self.patch = patch
        self.num_classes = num_classes
        self.ffn_tile = ffn_tile if ffn_tile is not None else min(1024, d_ffn)
        assert d_ffn % self.ffn_tile == 0

        key = jax.random.PRNGKey(seed)
        keys = jax.random.split(key, 8 + 8 * cnt_layer)
        ki = iter(keys)

        def nrm(k, shape, scale=0.02, dtype=jnp.bfloat16):
            return (scale * jax.random.normal(k, shape, jnp.float32)).astype(dtype)

        # TODO(synk): self.L_model is a pretrained DeBERTa-v3-large; stand-in is
        # a deterministic token-embedding table producing [B, L, l_dim].
        self.tok_emb = nrm(next(ki), (vocab_size, l_dim), 1.0, jnp.float32)

        # TODO(synk): self.I_model is the pretrained ViT trunk (patch_embed,
        # blocks, norms); stand-in is the patch-embed projection only
        # (im2col + tiled Pallas matmul) producing [B, P, repre_dim].
        patch_dim = img_channels * patch * patch
        self.patch_w_t = nrm(next(ki), (patch_dim, D))

        # L_toI_linear: nn.Linear(l_dim, repre_dim, bias=False); stored as W.T.
        self.l_to_i_w_t = nrm(next(ki), (l_dim, D))

        # fusion: ModuleList of VL_bridge_encoder_layer (weights stored bf16,
        # transposed [in, out]; K/V in-projections fused into one [D, 2D];
        # 1/sqrt(head_dim) folded into wq/bq so the kernel never scales scores).
        scale = 1.0 / math.sqrt(D // num_heads)
        self.fusion = []
        for _ in range(cnt_layer):
            wq = nrm(next(ki), (D, D))
            layer = {
                "wq": (scale * wq.astype(jnp.float32)).astype(jnp.bfloat16),
                "bq": jnp.zeros((1, D), jnp.float32),   # zero bias (scale folded)
                "wkv": nrm(next(ki), (D, 2 * D)),
                "bkv": jnp.zeros((2 * D,), jnp.float32),
                "wo": nrm(next(ki), (D, D)),
                "bo": jnp.zeros((1, D), jnp.float32),
                "w1": nrm(next(ki), (D, d_ffn)),
                "w2": nrm(next(ki), (d_ffn, D)),
                "ln_g": jnp.ones((1, D), jnp.float32),
                "ln_b": jnp.zeros((1, D), jnp.float32),
            }
            self.fusion.append(layer)

        # TODO(synk): self.pooler uses pretrained img_model.attn_pool / fc_norm /
        # head; stand-in = mean-pool over patches + LayerNorm (head = Identity).
        self.fc_norm_g = jnp.ones((1, D), jnp.float32)
        self.fc_norm_b = jnp.zeros((1, D), jnp.float32)

        # final classifier nn.Linear(repre_dim, 5), stored as W.T and
        # lane-padded to 128 once here (sliced back after the kernel).
        nc_pad = _round_up(num_classes, 128)
        head_w = nrm(next(ki), (D, num_classes))
        self.head_w_t = jnp.pad(head_w, ((0, 0), (0, nc_pad - num_classes)))
        self.head_b = jnp.zeros((1, nc_pad), jnp.float32)

    def _im2col(self, img):
        # img: [B, C, H, W] (NCHW) -> [B, P, C*p*p], matching Conv2d(k=p, s=p)
        B, C, H, W = img.shape
        p = self.patch
        x = img.reshape(B, C, H // p, p, W // p, p)
        x = jnp.transpose(x, (0, 2, 4, 1, 3, 5))        # [B, H/p, W/p, C, p, p]
        return x.reshape(B, (H // p) * (W // p), C * p * p)

    def __call__(self, img, token_ids, atten_mask):
        B = img.shape[0]
        D = self.repre_dim

        # text_repre = L_model(token_ids).last_hidden_state   (stand-in)
        text_repre = self.tok_emb[token_ids]                       # [B, L, l_dim]
        # img_repre = I_model(img)                               (stand-in)
        patches = self._im2col(img.astype(jnp.float32))            # [B, P, Cpp]
        img_repre = pallas_linear(patches, self.patch_w_t,
                                  out_dtype=jnp.bfloat16)          # [B, P, D]
        # L_toI = self.L_toI_linear(text_repre)   (bias=False)
        l_to_i = pallas_linear(text_repre, self.l_to_i_w_t,
                               out_dtype=jnp.bfloat16)             # [B, L, D]

        P = img_repre.shape[1]
        L = l_to_i.shape[1]
        # bf16 packs 16 rows per sublane group -> 16-aligned tiles; 256-wide
        # query tiles when P allows (fills the 2x256x256 MXU on v6e/v7x).
        tp = 256 if P >= 256 else min(128, _round_up(P, 16))
        Pp = _round_up(P, tp)
        Lp = _round_up(L, 16)

        img_p = img_repre if Pp == P else jnp.pad(
            img_repre, ((0, 0), (0, Pp - P), (0, 0)))
        kv_p = l_to_i if Lp == L else jnp.pad(
            l_to_i, ((0, 0), (0, Lp - L), (0, 0)))
        # key_padding_mask as a precomputed additive bias (0 valid / -1e30
        # masked); padded key positions are masked out.
        mask_p = jnp.pad(atten_mask.astype(jnp.float32),
                         ((0, 0), (0, Lp - L)))
        bias = jnp.where(mask_p > 0, 0.0, -1e30).astype(
            jnp.float32).reshape(B, 1, Lp)

        # fusion layers: K/V projected once per layer (hoisted out of the
        # per-query-tile kernel), then cross-attention + FFN + residual + LN
        # fused into one pallas_call gridded over (batch, query-tile, F-chunk).
        x = img_p
        for layer in self.fusion:
            kv = pallas_linear(kv_p, layer["wkv"], layer["bkv"],
                               out_dtype=jnp.bfloat16)             # [B, Lp, 2D]
            k_l, v_l = kv[..., :D], kv[..., D:]
            x = pallas_fusion_layer(x, k_l, v_l, bias, layer,
                                    self.num_heads, tp, self.ffn_tile)
        img_repre = x[:, :P, :]

        # pooler stand-in + classifier head fused into one kernel.
        # TODO(synk): could be fused into the last fusion layer's epilogue to
        # save one more read of the [B, P, D] fused representation.
        logits = pallas_pool_head(img_repre, self.fc_norm_g, self.fc_norm_b,
                                  self.head_w_t, self.head_b)      # [B, NCpad]
        return logits[:, :self.num_classes]


# ----------------------------------------------------------------------------
# Demo
# ----------------------------------------------------------------------------

if __name__ == "__main__":
    key = jax.random.PRNGKey(0)
    B, C, H, W = 2, 3, 16, 16
    L = 8

    # Small demo dims (originals: repre_dim=1152, d_ffn=4096, l_dim=1024).
    # ffn_tile=128 so the F-chunk streaming path (2 chunks) is exercised.
    model = VLFusionEncodersPallas(
        cnt_layer=2, repre_dim=128, d_ffn=256, l_dim=64, num_heads=8,
        vocab_size=100, img_channels=C, patch=4, num_classes=5,
        ffn_tile=128, seed=0)

    k1, k2 = jax.random.split(key)
    img = jax.random.normal(k1, (B, C, H, W), jnp.float32)
    token_ids = jax.random.randint(k2, (B, L), 0, 100)
    atten_mask = jnp.array([[1, 1, 1, 1, 1, 1, 1, 1],
                            [1, 1, 1, 1, 1, 0, 0, 0]], dtype=jnp.int32)

    logits = model(img, token_ids, atten_mask)
    jax.block_until_ready(logits)
    assert logits.shape == (B, 5)
    assert bool(jnp.all(jnp.isfinite(logits)))
    print("KERNEL_OK")
</pallas_src>

<mosaic_0001>
module attributes {stable_mosaic.version = 11 : i64} {
  func.func @_matmul_1k_kernel(%arg0: i32, %arg1: i32, %arg2: memref<32x48xbf16, #tpu.memory_space<vmem>>, %arg3: memref<48x128xbf16, #tpu.memory_space<vmem>>, %arg4: memref<32x128xbf16, #tpu.memory_space<vmem>>) attributes {dimension_semantics = [#tpu.dimension_semantics<parallel>, #tpu.dimension_semantics<parallel>], iteration_bounds = array<i64: 1, 1>, scalar_prefetch = 0 : i64, scratch_operands = 0 : i64, tpu.core_type = #tpu.core_type<tc>, window_params = [{transform_indices = @transform_0, window_bounds = array<i64: 32, 48>}, {transform_indices = @transform_1, window_bounds = array<i64: 48, 128>}, {transform_indices = @transform_2, window_bounds = array<i64: 32, 128>}]} {
    %c0 = arith.constant 0 : index
    %c0_0 = arith.constant 0 : index
    %0 = vector.load %arg2[%c0, %c0_0] : memref<32x48xbf16, #tpu.memory_space<vmem>>, vector<32x48xbf16>
    %c0_1 = arith.constant 0 : index
    %c0_2 = arith.constant 0 : index
    %1 = vector.load %arg3[%c0_1, %c0_2] : memref<48x128xbf16, #tpu.memory_space<vmem>>, vector<48x128xbf16>
    %cst = arith.constant dense<0.000000e+00> : vector<32x128xf32>
    %2 = tpu.matmul %0, %1, %cst {dimension_numbers = #tpu.dot_dimension_numbers<[1], [0], [0], [1], [0, 0, 1, 1], [], []>} : vector<32x48xbf16>, vector<48x128xbf16>, vector<32x128xf32> -> vector<32x128xf32>
    %3 = arith.truncf %2 : vector<32x128xf32> to vector<32x128xbf16>
    %c0_3 = arith.constant 0 : index
    %c0_4 = arith.constant 0 : index
    %4 = vector.load %arg4[%c0_3, %c0_4] : memref<32x128xbf16, #tpu.memory_space<vmem>>, vector<32x128xbf16>
    tpu.vector_store %arg4[%c0_3, %c0_4], %3 {strides = array<i32>} : memref<32x128xbf16, #tpu.memory_space<vmem>>, vector<32x128xbf16>,
    return
  }
  func.func @transform_0(%arg0: i32, %arg1: i32) -> (i32, i32) {
    %c0_i32 = arith.constant 0 : i32
    %c0_i32_0 = arith.constant 0 : i32
    return %arg0, %c0_i32 : i32, i32
  }
  func.func @transform_1(%arg0: i32, %arg1: i32) -> (i32, i32) {
    %c0_i32 = arith.constant 0 : i32
    %c0_i32_0 = arith.constant 0 : i32
    return %c0_i32, %arg1 : i32, i32
  }
  func.func @transform_2(%arg0: i32, %arg1: i32) -> (i32, i32) {
    %c0_i32 = arith.constant 0 : i32
    return %arg0, %arg1 : i32, i32
  }
}

</mosaic_0001>

<llo_original>
// kernel: tpu_custom_call.1
$region0: #{tpu_custom_call.1}
  #allocation0 [shape = 'u32[]', space=smem, size = 0x4, offset = 0x4, fixed_abs, tag = 'smem constant byte address 0x4 - core index']
  #allocation1 [shape = 'u32[144,128]{1,0:T(1,128)}', space=vmem, size = 0x12000, scoped, tag = 'internal scratch']
  %s0 = inlined_call_operand.hbm [shape: bf16[32,48], index: 0, kind: input, shape index: {}]
  %s1 = inlined_call_operand.hbm [shape: bf16[48,128], index: 1, kind: input, shape index: {}]
  %s2 = inlined_call_operand.hbm [shape: bf16[32,128], index: 2, kind: output, shape index: {}]
  %s3 = sld [smem:[#allocation0]]
  $region26: #{tpu_custom_call.1} parent=0
    _
  %s5 = ssub.s32 1, %s3
  %s6 = scalar_select 0, %s5, %s3
  $region1: #{tpu_custom_call.1} parent=0
    #allocation2 [shape = 'u8[8192]{0}', space=vmem, size = 0x2000, scoped, tag = 'input window, operand 0, single buffered']
    #allocation3 [shape = 's32[1]{0}', space=sflag, size = 0x4, scoped, tag = 'scoped memory for tpu_custom_call.1']
    #allocation4 [shape = 's32[1]{0}', space=sflag, size = 0x4, scoped, tag = 'scoped memory for tpu_custom_call.1']
    #allocation5 [shape = 'u8[12288]{0}', space=vmem, size = 0x3000, scoped, tag = 'input window, operand 1, single buffered']
    #allocation6 [shape = 's32[1]{0}', space=sflag, size = 0x4, scoped, tag = 'scoped memory for tpu_custom_call.1']
    #allocation7 [shape = 'u8[8192]{0}', space=vmem, size = 0x2000, scoped, tag = 'output window, operand 0, single buffered']
    %7 = vsyncpa [#allocation3], 0
    %8 = vsyncpa [#allocation6], 0
    %9 = vsyncpa [#allocation4], 0
    // Predicated region
    $region2: #{tpu_custom_call.1} parent=1 // pred_check
      _
    $region3: #{tpu_custom_call.1} parent=1 // pred_check_branch
      %11 = sbr.rel (0) target = $region5
    $region4: #{tpu_custom_call.1} parent=1 // pred_region
      %s13 = ssub.s32 256, 256
      %14 = vsyncadd [#allocation3], %s13
      %s15 = sshll.u32 [#allocation2], 4
      %s16 = int_to_ptr.vmem [resolvable:$true] %s15
      %21 = dma.hbm_to_vmem [thread:$0]  %s0, 256, %s16, [#allocation3], 64, 64, 4
    $region5: #{tpu_custom_call.1} parent=1 // pred_fallthru
      _
    // Predicated region
    $region6: #{tpu_custom_call.1} parent=1 // pred_check
      _
    $region7: #{tpu_custom_call.1} parent=1 // pred_check_branch
      %23 = sbr.rel (0) target = $region9
    $region8: #{tpu_custom_call.1} parent=1 // pred_region
      %s25 = ssub.s32 384, 384
      %26 = vsyncadd [#allocation6], %s25
      %s27 = sshll.u32 [#allocation5], 4
      %s28 = int_to_ptr.vmem [resolvable:$true] %s27
      %33 = dma.hbm_to_vmem [thread:$0]  %s1, 384, %s28, [#allocation6], 64, 64, 4
    $region9: #{tpu_custom_call.1} parent=1 // pred_fallthru
      _
    // Predicated region
    $region10: #{tpu_custom_call.1} parent=1 // pred_check
      _
    $region11: #{tpu_custom_call.1} parent=1 // pred_check_branch
      %35 = sbr.rel (0) target = $region13
    $region12: #{tpu_custom_call.1} parent=1 // pred_region
      %36 = dma.done [#allocation3], 256
    $region13: #{tpu_custom_call.1} parent=1 // pred_fallthru
      _
    // Predicated region
    $region14: #{tpu_custom_call.1} parent=1 // pred_check
      _
    $region15: #{tpu_custom_call.1} parent=1 // pred_check_branch
      %38 = sbr.rel (0) target = $region17
    $region16: #{tpu_custom_call.1} parent=1 // pred_region
      %39 = dma.done [#allocation6], 384
    $region17: #{tpu_custom_call.1} parent=1 // pred_fallthru
      _
    %v41 = vld [vmem:[#allocation2] sm:$0xf]
    %v42 = vld [vmem:[#allocation2 + $0x4] sm:$0xf]
    %v43 = vld [vmem:[#allocation2 + $0x8] sm:$0xf]
    %v44 = vld [vmem:[#allocation2 + $0xc] sm:$0xf]
    %v45 = vld [vmem:[#allocation5] sm:$0xf]
    %v46 = vld [vmem:[#allocation5 + $0x4] sm:$0xf]
    %v47 = vld [vmem:[#allocation5 + $0x8] sm:$0xf]
    %v48 = vld [vmem:[#allocation5 + $0xc] sm:$0xf]
    %v49 = vld [vmem:[#allocation5 + $0x10] sm:$0xf]
    %v50 = vld [vmem:[#allocation5 + $0x14] sm:$0xf]
    %v55 = vunpack.c.l.b16 %v41
    %v56 = vunpack.c.l.b16 %v42
    %v57 = vunpack.c.l.b16 %v43
    %v58 = vunpack.c.l.b16 %v44
    %v59 = vpack.c.b16 %v56, %v55
    %v60 = vpack.c.b16 %v58, %v57
    %v67 = vunpack.c.l.b16 %v45
    %v68 = vunpack.c.l.b16 %v46
    %v69 = vunpack.c.l.b16 %v47
    %v70 = vunpack.c.l.b16 %v48
    %v71 = vunpack.c.l.b16 %v49
    %v72 = vunpack.c.l.b16 %v50
    %v73 = vpack.c.b16 %v68, %v67
    %v74 = vpack.c.b16 %v70, %v69
    %v75 = vpack.c.b16 %v72, %v71
    %vm79 = vcmask 392192
    %v81 = vsel %vm79, %v59, 0
    %v84 = vsel %vm79, %v60, 0
    %86 = vmatprep.subr.bf16.mxu0 0
    %87 = vmatpush1.bf16.msra.mxu0 %v73
    %88 = vmatprep.subr.bf16.mxu0 0
    %89 = vmatpush1.bf16.msra.mxu0 %v74
    %90 = vmatprep.subr.bf16.mxu0 0
    %91 = vmatpush1.bf16.msra.mxu0 %v75
    %92 = vmatprep.subr.bf16.mxu0 0
    %93 = vmatpush1.bf16.msra.mxu0 0
    %94 = vmatprep.subr.bf16.mxu0 0
    %95 = vmatpush1.bf16.msra.mxu0 0
    %96 = vmatprep.subr.bf16.mxu0 0
    %97 = vmatpush1.bf16.msra.mxu0 0
    %98 = vmatprep.subr.bf16.mxu0 0
    %99 = vmatpush1.bf16.msra.mxu0 0
    %100 = vmatprep.subr.bf16.mxu0 0
    %101 = vmatpush1.bf16.msra.mxu0 0
    %102 = vmatprep.subr.bf16.mxu0 0
    %103 = vmatpush1.bf16.msra.mxu0 0
    %104 = vmatprep.subr.bf16.mxu0 0
    %105 = vmatpush1.bf16.msra.mxu0 0
    %106 = vmatprep.subr.bf16.mxu0 0
    %107 = vmatpush1.bf16.msra.mxu0 0
    %108 = vmatprep.subr.bf16.mxu0 0
    %109 = vmatpush1.bf16.msra.mxu0 0
    %110 = vmatprep.subr.bf16.mxu0 0
    %111 = vmatpush1.bf16.msra.mxu0 0
    %112 = vmatprep.subr.bf16.mxu0 0
    %113 = vmatpush1.bf16.msra.mxu0 0
    %114 = vmatprep.subr.bf16.mxu0 0
    %115 = vmatpush1.bf16.msra.mxu0 0
    %116 = vmatprep.subr.bf16.mxu0 0
    %117 = vmatpush1.bf16.msra.mxu0 0
    %118 = vmatprep.mubr.bf16.mxu0 0
    %119 = vmatmul.mubr.bf16.gmra.mrb[0].mxu0 %v81
    %v120 = vpop.f32.mrb[0].mxu0
    %v121 = vadd.f32 0.0, %v120
    %v122 = vpop.f32.mrb[0].mxu0
    %v123 = vpop.f32.mrb[0].mxu0
    %v124 = vadd.f32 0.0, %v123
    %v125 = vpop.f32.mrb[0].mxu0
    %126 = vmatprep.mubr.bf16.mxu0 0
    %127 = vmatmul.mubr.bf16.gmra.mrb[0].mxu0 %v84
    %v128 = vpop.f32.mrb[0].mxu0
    %v129 = vadd.f32 0.0, %v128
    %v130 = vpop.f32.mrb[0].mxu0
    %v131 = vpop.f32.mrb[0].mxu0
    %v132 = vadd.f32 0.0, %v131
    %v133 = vpop.f32.mrb[0].mxu0
    %134 = vdwg.mxu0
    %v135 = vpack.c.bf16 %v124, %v121
    %v136 = vpack.c.bf16 %v132, %v129
    %v139 = vunpack.c.l.b16 %v135
    %v140 = vunpack.c.h.b16 %v135
    %v141 = vunpack.c.l.b16 %v136
    %v142 = vunpack.c.h.b16 %v136
    %v143 = vpack.c.b16 %v139, %v139
    %v144 = vpack.c.b16 %v140, %v140
    %v145 = vpack.c.b16 %v141, %v141
    %v146 = vpack.c.b16 %v142, %v142
    %151 = vst [vmem:[#allocation7] sm:$0xf] %v143
    %152 = vst [vmem:[#allocation7 + $0x4] sm:$0xf] %v144
    %153 = vst [vmem:[#allocation7 + $0x8] sm:$0xf] %v145
    %154 = vst [vmem:[#allocation7 + $0xc] sm:$0xf] %v146
    // Predicated region
    $region18: #{tpu_custom_call.1} parent=1 // pred_check
      _
    $region19: #{tpu_custom_call.1} parent=1 // pred_check_branch
      %156 = sbr.rel (0) target = $region21
    $region20: #{tpu_custom_call.1} parent=1 // pred_region
      %s158 = ssub.s32 256, 256
      %159 = vsyncadd [#allocation4], %s158
      %s160 = sshll.u32 [#allocation7], 4
      %s161 = int_to_ptr.vmem [resolvable:$true] %s160
      %166 = dma.vmem_to_hbm [thread:$0]  %s161, 256, %s2, [#allocation4], 64, 64, 4
    $region21: #{tpu_custom_call.1} parent=1 // pred_fallthru
      _
    // Predicated region
    $region22: #{tpu_custom_call.1} parent=1 // pred_check
      _
    $region23: #{tpu_custom_call.1} parent=1 // pred_check_branch
      %168 = sbr.rel (0) target = $region25
    $region24: #{tpu_custom_call.1} parent=1 // pred_region
      %169 = dma.done [#allocation4], 256
    $region25: #{tpu_custom_call.1} parent=1 // pred_fallthru
      _
    %170 = vsyncpa [#allocation3], 1
    %171 = vsyncpa [#allocation6], 1
    %172 = vsyncpa [#allocation4], 1

</llo_original>
